<compile_context>
chip_gen: v6e
topology: v6e:2x2x1
jax: 0.10.0
libtpu: 0.0.40
codegen_flags: <defaults>
</compile_context>

<pallas_src>
import math

import jax
import jax.numpy as jnp
import numpy as np
from jax.experimental import pallas as pl
from jax.experimental.pallas import tpu as pltpu

# ----------------------------- model dimensions -----------------------------
B = 2                       # batch
T = 8                       # sequence length
E = 32                      # embedding dim
H = 4                       # num heads
G = 4                       # num query groups (== H -> MHA)
HD = E // H                 # head dim = 8
HALF = HD // 2              # 4
FF = 64                     # feed-forward intermediate size
QKV_OUT = (H + 2 * G) * HD  # 96
BT = B * T                  # 16 rows processed in one shot
EPS = 1e-6
SCALE = 1.0 / math.sqrt(HD)
NEG_INF = -1e9

# ---------------- packed parameter slab layout (f32, width 128) --------------
PW = 128
R_WQKV = 0      # (32,  96) fused QKV weight; Q/K half-major; gamma + scale folded
R_W13 = 32      # (32, 128) fused w1||w3; pre-FF gamma folded
R_WO = 64       # (32,  32) output projection
R_W2 = 96       # (64,  32) FF down projection
R_KM = 160      # (64,  32) per-head lane mask for sublane-stacked K (half-major)
R_VM = 224      # (64,  32) per-head lane mask for sublane-stacked V (head-major)
R_COS = 288     # (16,  32) RoPE cos table (half-major lanes)
R_SIN = 304     # (16,  32) RoPE sin table (half-major lanes, rotate-half sign folded)
R_BIAS = 320    # (16,  64) block-diagonal causal bias, tiled per head
P_ROWS = 336


def transformer_block_kernel(x_ref, p_ref, o_ref):
  """Fused TransformerBlock forward over all B*T rows, single invocation."""
  x = x_ref[...]                                              # (BT, E)

  # Static slices of the packed parameter slab (one DMA brought it all in).
  wqkv = p_ref[R_WQKV:R_WQKV + E, 0:QKV_OUT]                  # (32, 96)
  w13 = p_ref[R_W13:R_W13 + E, 0:2 * FF]                      # (32, 128)
  wo = p_ref[R_WO:R_WO + E, 0:E]                              # (32, 32)
  w2 = p_ref[R_W2:R_W2 + FF, 0:E]                             # (64, 32)
  kmask = p_ref[R_KM:R_KM + H * BT, 0:E]                      # (64, 32)
  vmask = p_ref[R_VM:R_VM + H * BT, 0:E]                      # (64, 32)
  cos = p_ref[R_COS:R_COS + BT, 0:E]                          # (16, 32)
  sin = p_ref[R_SIN:R_SIN + BT, 0:E]                          # (16, 32)
  bias = p_ref[R_BIAS:R_BIAS + BT, 0:H * BT]                  # (16, 64)

  # ---- pre-attention RMSNorm (gamma folded into wqkv rows) ----
  xn = x * jax.lax.rsqrt(jnp.mean(x * x, axis=-1, keepdims=True) + EPS)

  # ---- fused QKV projection; columns are [Q half-major | K half-major | V] ----
  qkv = jnp.dot(xn, wqkv, preferred_element_type=jnp.float32)  # (BT, 96)
  q = qkv[:, 0:E]          # 1/sqrt(head_dim) already folded into these columns
  k = qkv[:, E:2 * E]
  v = qkv[:, 2 * E:3 * E]

  # ---- RoPE: in the half-major layout rotate-half is a lane roll by E//2 (XLU);
  #      the (-t2, +t1) sign lives in the sin table. No MXU, no slicing per head.
  q = q * cos + pltpu.roll(q, shift=E // 2, axis=1) * sin
  k = k * cos + pltpu.roll(k, shift=E // 2, axis=1) * sin

  # ---- all-head scores in ONE matmul: K replicated H times along sublanes,
  #      each copy lane-masked to its head -> (BT, H*BT) scores. ----
  k_stk = jnp.concatenate([k] * H, axis=0) * kmask            # (64, 32)
  s = jax.lax.dot_general(q, k_stk, (((1,), (1,)), ((), ())),
                          preferred_element_type=jnp.float32) + bias  # (16, 64)

  # ---- softmax: one shared row-max over all heads (exact per head because
  #      softmax is shift-invariant; head score ranges are close, so no
  #      underflow concern at these magnitudes). Per-head denominators are
  #      recovered with a 0/1 matmul against the head mask. ----
  m = jnp.max(s, axis=-1, keepdims=True)
  p = jnp.exp(s - m)                                          # (16, 64)
  v_stk = jnp.concatenate([v] * H, axis=0) * vmask            # (64, 32)
  y_un = jnp.dot(p, v_stk, preferred_element_type=jnp.float32)   # (16, 32) un-normalized
  den = jnp.dot(p, vmask, preferred_element_type=jnp.float32)    # (16, 32) per-head sums
  y = y_un / den                                              # exact division

  # ---- residual + output projection (single matmul, heads already head-major) ----
  x1 = x + jnp.dot(y, wo, preferred_element_type=jnp.float32)

  # ---- pre-FF RMSNorm (gamma folded into w13) + gated FF (w1||w3 fused) ----
  x1n = x1 * jax.lax.rsqrt(jnp.mean(x1 * x1, axis=-1, keepdims=True) + EPS)
  h13 = jnp.dot(x1n, w13, preferred_element_type=jnp.float32)    # (16, 128)
  ff = jnp.dot(jax.nn.silu(h13[:, :FF]) * h13[:, FF:], w2,
               preferred_element_type=jnp.float32)
  o_ref[...] = x1 + ff


def prepare_params(w_qkv, w_o, cos_half, sin_half, w1, w3, w2, g_pre, g_ff):
  """One-time layout plumbing: permute / fuse / fold weights, build masks and
  tables, and pack everything into a single (336, 128) f32 slab. Cache this."""
  w_qkv = np.asarray(w_qkv); w_o = np.asarray(w_o)
  w1 = np.asarray(w1); w3 = np.asarray(w3); w2 = np.asarray(w2)
  g_pre = np.asarray(g_pre); g_ff = np.asarray(g_ff)
  cos_half = np.asarray(cos_half); sin_half = np.asarray(sin_half)

  # Column permutation: group-interleaved [q_g|k_g|v_g] -> [Q | K | V], with Q
  # and K in half-major order (all first rotary halves, then all second halves)
  # and V head-major.
  perm = np.zeros(QKV_OUT, np.int64)
  for h in range(H):
    for d in range(HD):
      hm = h * HALF + d if d < HALF else E // 2 + h * HALF + (d - HALF)
      perm[hm] = h * 3 * HD + d                                # Q
      perm[E + hm] = h * 3 * HD + HD + d                       # K
      perm[2 * E + h * HD + d] = h * 3 * HD + 2 * HD + d       # V
  wqkv_p = w_qkv[:, perm] * g_pre.reshape(E, 1)   # fold pre-attention RMSNorm gamma
  # Fold 1/sqrt(head_dim) into the Q columns (exact only because RoPE is linear in q).
  wqkv_p[:, :E] *= SCALE

  # Fused w1 || w3 with pre-FF RMSNorm gamma folded into the rows.
  w13 = np.concatenate([w1, w3], axis=1) * g_ff.reshape(E, 1)

  # RoPE tables in half-major lane order (lane l <-> rotary index l % HALF).
  # Sign of the rotated half (-t2 | +t1) is folded into sin.
  cos32 = np.tile(np.tile(cos_half, (1, 2 * H)), (B, 1)).astype(np.float32)
  sign = np.concatenate([-np.ones(E // 2), np.ones(E // 2)]).astype(np.float32)
  sin32 = (np.tile(np.tile(sin_half, (1, 2 * H)), (B, 1)) * sign[None, :]).astype(np.float32)

  # Block-diagonal causal bias over batch-stacked rows, tiled once per head.
  r = np.arange(BT)
  bias16 = np.where((r[:, None] // T == r[None, :] // T) & (r[None, :] <= r[:, None]),
                    0.0, NEG_INF).astype(np.float32)
  bias64 = np.tile(bias16, (1, H))

  # Per-head lane masks for the sublane-stacked K (half-major) and V (head-major).
  kmask = np.zeros((H * BT, E), np.float32)
  vmask = np.zeros((H * BT, E), np.float32)
  for h in range(H):
    kmask[h * BT:(h + 1) * BT, h * HALF:(h + 1) * HALF] = 1.0
    kmask[h * BT:(h + 1) * BT, E // 2 + h * HALF:E // 2 + (h + 1) * HALF] = 1.0
    vmask[h * BT:(h + 1) * BT, h * HD:(h + 1) * HD] = 1.0

  slab = np.zeros((P_ROWS, PW), np.float32)
  slab[R_WQKV:R_WQKV + E, :QKV_OUT] = wqkv_p
  slab[R_W13:R_W13 + E, :2 * FF] = w13
  slab[R_WO:R_WO + E, :E] = w_o
  slab[R_W2:R_W2 + FF, :E] = w2
  slab[R_KM:R_KM + H * BT, :E] = kmask
  slab[R_VM:R_VM + H * BT, :E] = vmask
  slab[R_COS:R_COS + BT, :E] = cos32
  slab[R_SIN:R_SIN + BT, :E] = sin32
  slab[R_BIAS:R_BIAS + BT, :H * BT] = bias64
  return jnp.asarray(slab)


@jax.jit
def transformer_block_forward(x, params):
  """Per-step work: reshape + one pallas_call (2 input DMAs), no grid, all VMEM."""
  out = pl.pallas_call(
      transformer_block_kernel,
      out_shape=jax.ShapeDtypeStruct((BT, E), jnp.float32),
  )(x.reshape(BT, E), params)
  return out.reshape(B, T, E)


# ----------------------------- pure-JAX reference -----------------------------
def reference_forward(x, w_qkv, w_o, cos_half, sin_half, w1, w3, w2, g_pre, g_ff):
  def rms(t, g):
    return t * jax.lax.rsqrt(jnp.mean(t * t, axis=-1, keepdims=True) + EPS) * g

  cos = jnp.tile(cos_half, (1, 2))     # cos.repeat(1, 2) -> (T, HD)
  sin = jnp.tile(sin_half, (1, 2))

  x_norm = rms(x, g_pre)
  qkv = x_norm @ w_qkv                               # (B, T, 96)
  qkv = qkv.reshape(B, T, G, 3, HD)                  # qkv_transpose_before_split=False
  q, k, v = qkv[..., 0, :], qkv[..., 1, :], qkv[..., 2, :]   # (B, T, H, HD)

  def rope(t):
    c = cos[None, :, None, :]
    s = sin[None, :, None, :]
    t1, t2 = t[..., :HALF], t[..., HALF:]
    rotd = jnp.concatenate([-t2, t1], axis=-1)
    return t * c + rotd * s

  q, k = rope(q), rope(k)
  q = q.transpose(0, 2, 1, 3)
  k = k.transpose(0, 2, 1, 3)
  v = v.transpose(0, 2, 1, 3)
  mask = jnp.where(jnp.tril(jnp.ones((T, T), bool)), 0.0, NEG_INF)
  scores = jnp.einsum("bhqd,bhkd->bhqk", q, k) * SCALE + mask[None, None]
  p = jax.nn.softmax(scores, axis=-1)
  y = jnp.einsum("bhqk,bhkd->bhqd", p, v).transpose(0, 2, 1, 3).reshape(B, T, E)
  x1 = x + y @ w_o
  x1n = rms(x1, g_ff)
  return x1 + (jax.nn.silu(x1n @ w1) * (x1n @ w3)) @ w2


if __name__ == "__main__":
  key = jax.random.PRNGKey(0)
  keys = jax.random.split(key, 8)

  x = jax.random.normal(keys[0], (B, T, E), jnp.float32)

  # Deterministic synthetic parameters (stored as (in_features, out_features)).
  w_qkv = 0.05 * jax.random.normal(keys[1], (E, QKV_OUT), jnp.float32)
  w_o = 0.05 * jax.random.normal(keys[2], (E, E), jnp.float32)
  w1 = 0.05 * jax.random.normal(keys[3], (E, FF), jnp.float32)
  w3 = 0.05 * jax.random.normal(keys[4], (E, FF), jnp.float32)
  w2 = 0.05 * jax.random.normal(keys[5], (FF, E), jnp.float32)
  g_pre = 1.0 + 0.05 * jax.random.normal(keys[6], (E,), jnp.float32)
  g_ff = 1.0 + 0.05 * jax.random.normal(keys[7], (E,), jnp.float32)

  # RoPE half-tables (T, HD//2), exactly what _embed_rope receives before repeat.
  pos = jnp.arange(T, dtype=jnp.float32)[:, None]
  inv_freq = 1.0 / (10000.0 ** (jnp.arange(0, HALF, dtype=jnp.float32) / HALF))
  angles = pos * inv_freq[None, :]
  cos_half = jnp.cos(angles)
  sin_half = jnp.sin(angles)

  # One-time prep (cache across steps); per-step work is just the forward call.
  params = prepare_params(w_qkv, w_o, cos_half, sin_half, w1, w3, w2, g_pre, g_ff)

  out = transformer_block_forward(x, params)
  out = jax.block_until_ready(out)

  ref = reference_forward(x, w_qkv, w_o, cos_half, sin_half, w1, w3, w2,
                          g_pre, g_ff)
  # Exact division is back in the softmax, so tolerance is tightened vs. the
  # previous version; remaining deltas are f32 rounding from the weight folds.
  np.testing.assert_allclose(np.asarray(out), np.asarray(ref),
                             rtol=2e-4, atol=2e-4)

  print("KERNEL_OK")
</pallas_src>

<mosaic_0001>
module attributes {stable_mosaic.version = 11 : i64} {
  func.func @transformer_block_kernel(%arg0: memref<16x32xf32, #tpu.memory_space<vmem>>, %arg1: memref<336x128xf32, #tpu.memory_space<vmem>>, %arg2: memref<16x32xf32, #tpu.memory_space<vmem>>) attributes {dimension_semantics = [], scalar_prefetch = 0 : i64, scratch_operands = 0 : i64, tpu.core_type = #tpu.core_type<tc>} {
    %c0 = arith.constant 0 : index
    %c0_0 = arith.constant 0 : index
    %0 = vector.load %arg0[%c0, %c0_0] : memref<16x32xf32, #tpu.memory_space<vmem>>, vector<16x32xf32>
    %c0_1 = arith.constant 0 : index
    %c0_2 = arith.constant 0 : index
    %1 = vector.load %arg1[%c0_1, %c0_2] : memref<336x128xf32, #tpu.memory_space<vmem>>, vector<32x96xf32>
    %c32 = arith.constant 32 : index
    %c0_3 = arith.constant 0 : index
    %2 = vector.load %arg1[%c32, %c0_3] : memref<336x128xf32, #tpu.memory_space<vmem>>, vector<32x128xf32>
    %c64 = arith.constant 64 : index
    %c0_4 = arith.constant 0 : index
    %3 = vector.load %arg1[%c64, %c0_4] : memref<336x128xf32, #tpu.memory_space<vmem>>, vector<32x32xf32>
    %c96 = arith.constant 96 : index
    %c0_5 = arith.constant 0 : index
    %4 = vector.load %arg1[%c96, %c0_5] : memref<336x128xf32, #tpu.memory_space<vmem>>, vector<64x32xf32>
    %c160 = arith.constant 160 : index
    %c0_6 = arith.constant 0 : index
    %5 = vector.load %arg1[%c160, %c0_6] : memref<336x128xf32, #tpu.memory_space<vmem>>, vector<64x32xf32>
    %c224 = arith.constant 224 : index
    %c0_7 = arith.constant 0 : index
    %6 = vector.load %arg1[%c224, %c0_7] : memref<336x128xf32, #tpu.memory_space<vmem>>, vector<64x32xf32>
    %c288 = arith.constant 288 : index
    %c0_8 = arith.constant 0 : index
    %7 = vector.load %arg1[%c288, %c0_8] : memref<336x128xf32, #tpu.memory_space<vmem>>, vector<16x32xf32>
    %c304 = arith.constant 304 : index
    %c0_9 = arith.constant 0 : index
    %8 = vector.load %arg1[%c304, %c0_9] : memref<336x128xf32, #tpu.memory_space<vmem>>, vector<16x32xf32>
    %c320 = arith.constant 320 : index
    %c0_10 = arith.constant 0 : index
    %9 = vector.load %arg1[%c320, %c0_10] : memref<336x128xf32, #tpu.memory_space<vmem>>, vector<16x64xf32>
    %10 = arith.mulf %0, %0 : vector<16x32xf32>
    %cst = arith.constant dense<0.000000e+00> : vector<16xf32>
    %11 = vector.multi_reduction <add>, %10, %cst [1] : vector<16x32xf32> to vector<16xf32>
    %12 = vector.shape_cast %11 : vector<16xf32> to vector<16x1xf32>
    %cst_11 = arith.constant 3.200000e+01 : f32
    %13 = vector.broadcast %cst_11 : f32 to vector<16x1xf32>
    %14 = arith.divf %12, %13 : vector<16x1xf32>
    %cst_12 = arith.constant 9.99999997E-7 : f32
    %15 = vector.broadcast %cst_12 : f32 to vector<16x1xf32>
    %16 = arith.addf %14, %15 : vector<16x1xf32>
    %17 = math.rsqrt %16 : vector<16x1xf32>
    %18 = vector.broadcast %17 : vector<16x1xf32> to vector<16x32xf32>
    %19 = arith.mulf %0, %18 : vector<16x32xf32>
    %cst_13 = arith.constant dense<0.000000e+00> : vector<16x96xf32>
    %20 = tpu.matmul %19, %1, %cst_13 {dimension_numbers = #tpu.dot_dimension_numbers<[1], [0], [0], [1], [0, 0, 1, 1], [], []>} : vector<16x32xf32>, vector<32x96xf32>, vector<16x96xf32> -> vector<16x96xf32>
    %21 = vector.extract_strided_slice %20 {offsets = [0, 0], sizes = [16, 32], strides = [1, 1]} : vector<16x96xf32> to vector<16x32xf32>
    %22 = vector.extract_strided_slice %20 {offsets = [0, 32], sizes = [16, 32], strides = [1, 1]} : vector<16x96xf32> to vector<16x32xf32>
    %23 = vector.extract_strided_slice %20 {offsets = [0, 64], sizes = [16, 32], strides = [1, 1]} : vector<16x96xf32> to vector<16x32xf32>
    %24 = arith.mulf %21, %7 : vector<16x32xf32>
    %c16_i32 = arith.constant 16 : i32
    %25 = tpu.dynamic_rotate %21 by %c16_i32 dim 1 : vector<16x32xf32>, i32 -> vector<16x32xf32>
    %26 = arith.mulf %25, %8 : vector<16x32xf32>
    %27 = arith.addf %24, %26 : vector<16x32xf32>
    %28 = arith.mulf %22, %7 : vector<16x32xf32>
    %c16_i32_14 = arith.constant 16 : i32
    %29 = tpu.dynamic_rotate %22 by %c16_i32_14 dim 1 : vector<16x32xf32>, i32 -> vector<16x32xf32>
    %30 = arith.mulf %29, %8 : vector<16x32xf32>
    %31 = arith.addf %28, %30 : vector<16x32xf32>
    %32 = tpu.concatenate %31, %31, %31, %31 in 0 : vector<16x32xf32>, vector<16x32xf32>, vector<16x32xf32>, vector<16x32xf32> -> vector<64x32xf32>
    %33 = arith.mulf %32, %5 : vector<64x32xf32>
    %cst_15 = arith.constant dense<0.000000e+00> : vector<16x64xf32>
    %34 = tpu.matmul %27, %33, %cst_15 {dimension_numbers = #tpu.dot_dimension_numbers<[1], [1], [0], [0], [0, 0, 1, 0], [], []>} : vector<16x32xf32>, vector<64x32xf32>, vector<16x64xf32> -> vector<16x64xf32>
    %35 = arith.addf %34, %9 : vector<16x64xf32>
    %cst_16 = arith.constant dense<0xFF800000> : vector<16xf32>
    %36 = vector.multi_reduction <maximumf>, %35, %cst_16 [1] : vector<16x64xf32> to vector<16xf32>
    %37 = vector.shape_cast %36 : vector<16xf32> to vector<16x1xf32>
    %38 = vector.broadcast %37 : vector<16x1xf32> to vector<16x64xf32>
    %39 = arith.subf %35, %38 : vector<16x64xf32>
    %40 = math.exp %39 : vector<16x64xf32>
    %41 = tpu.concatenate %23, %23, %23, %23 in 0 : vector<16x32xf32>, vector<16x32xf32>, vector<16x32xf32>, vector<16x32xf32> -> vector<64x32xf32>
    %42 = arith.mulf %41, %6 : vector<64x32xf32>
    %cst_17 = arith.constant dense<0.000000e+00> : vector<16x32xf32>
    %43 = tpu.matmul %40, %42, %cst_17 {dimension_numbers = #tpu.dot_dimension_numbers<[1], [0], [0], [1], [0, 0, 1, 1], [], []>} : vector<16x64xf32>, vector<64x32xf32>, vector<16x32xf32> -> vector<16x32xf32>
    %cst_18 = arith.constant dense<0.000000e+00> : vector<16x32xf32>
    %44 = tpu.matmul %40, %6, %cst_18 {dimension_numbers = #tpu.dot_dimension_numbers<[1], [0], [0], [1], [0, 0, 1, 1], [], []>} : vector<16x64xf32>, vector<64x32xf32>, vector<16x32xf32> -> vector<16x32xf32>
    %45 = arith.divf %43, %44 : vector<16x32xf32>
    %cst_19 = arith.constant dense<0.000000e+00> : vector<16x32xf32>
    %46 = tpu.matmul %45, %3, %cst_19 {dimension_numbers = #tpu.dot_dimension_numbers<[1], [0], [0], [1], [0, 0, 1, 1], [], []>} : vector<16x32xf32>, vector<32x32xf32>, vector<16x32xf32> -> vector<16x32xf32>
    %47 = arith.addf %0, %46 : vector<16x32xf32>
    %48 = arith.mulf %47, %47 : vector<16x32xf32>
    %cst_20 = arith.constant dense<0.000000e+00> : vector<16xf32>
    %49 = vector.multi_reduction <add>, %48, %cst_20 [1] : vector<16x32xf32> to vector<16xf32>
    %50 = vector.shape_cast %49 : vector<16xf32> to vector<16x1xf32>
    %cst_21 = arith.constant 3.200000e+01 : f32
    %51 = vector.broadcast %cst_21 : f32 to vector<16x1xf32>
    %52 = arith.divf %50, %51 : vector<16x1xf32>
    %cst_22 = arith.constant 9.99999997E-7 : f32
    %53 = vector.broadcast %cst_22 : f32 to vector<16x1xf32>
    %54 = arith.addf %52, %53 : vector<16x1xf32>
    %55 = math.rsqrt %54 : vector<16x1xf32>
    %56 = vector.broadcast %55 : vector<16x1xf32> to vector<16x32xf32>
    %57 = arith.mulf %47, %56 : vector<16x32xf32>
    %cst_23 = arith.constant dense<0.000000e+00> : vector<16x128xf32>
    %58 = tpu.matmul %57, %2, %cst_23 {dimension_numbers = #tpu.dot_dimension_numbers<[1], [0], [0], [1], [0, 0, 1, 1], [], []>} : vector<16x32xf32>, vector<32x128xf32>, vector<16x128xf32> -> vector<16x128xf32>
    %59 = vector.extract_strided_slice %58 {offsets = [0, 0], sizes = [16, 64], strides = [1, 1]} : vector<16x128xf32> to vector<16x64xf32>
    %60 = arith.negf %59 : vector<16x64xf32>
    %61 = math.exp %60 : vector<16x64xf32>
    %cst_24 = arith.constant 1.000000e+00 : f32
    %62 = vector.broadcast %cst_24 : f32 to vector<16x64xf32>
    %63 = arith.addf %62, %61 : vector<16x64xf32>
    %64 = arith.divf %62, %63 : vector<16x64xf32>
    %65 = arith.mulf %59, %64 : vector<16x64xf32>
    %66 = vector.extract_strided_slice %58 {offsets = [0, 64], sizes = [16, 64], strides = [1, 1]} : vector<16x128xf32> to vector<16x64xf32>
    %67 = arith.mulf %65, %66 : vector<16x64xf32>
    %cst_25 = arith.constant dense<0.000000e+00> : vector<16x32xf32>
    %68 = tpu.matmul %67, %4, %cst_25 {dimension_numbers = #tpu.dot_dimension_numbers<[1], [0], [0], [1], [0, 0, 1, 1], [], []>} : vector<16x64xf32>, vector<64x32xf32>, vector<16x32xf32> -> vector<16x32xf32>
    %69 = arith.addf %47, %68 : vector<16x32xf32>
    %c0_26 = arith.constant 0 : index
    %c0_27 = arith.constant 0 : index
    %70 = vector.load %arg2[%c0_26, %c0_27] : memref<16x32xf32, #tpu.memory_space<vmem>>, vector<16x32xf32>
    tpu.vector_store %arg2[%c0_26, %c0_27], %69 {strides = array<i32>} : memref<16x32xf32, #tpu.memory_space<vmem>>, vector<16x32xf32>,
    return
  }
}

</mosaic_0001>

<llo_original>
// kernel: transformer_block_forward.1
$region0: #{transformer_block_forward.1}
  #allocation0 [shape = 'u32[]', space=smem, size = 0x4, offset = 0x4, fixed_abs, tag = 'smem constant byte address 0x4 - core index']
  #allocation1 [shape = 'u32[144,128]{1,0:T(1,128)}', space=vmem, size = 0x12000, scoped, tag = 'internal scratch']
  %s0 = inlined_call_operand.hbm [shape: f32[16,32], index: 0, kind: input, shape index: {}]
  %s1 = inlined_call_operand.hbm [shape: f32[336,128], index: 1, kind: input, shape index: {}]
  %s2 = inlined_call_operand.hbm [shape: f32[16,32], index: 2, kind: output, shape index: {}]
  %s3 = sld [smem:[#allocation0]]
  $region26: #{transformer_block_forward.1} parent=0
    _
  %s5 = ssub.s32 1, %s3
  %s6 = scalar_select 0, %s5, %s3
  $region1: #{transformer_block_forward.1} parent=0
    #allocation2 [shape = 'u8[8192]{0}', space=vmem, size = 0x2000, scoped, tag = 'input window, operand 0, single buffered']
    #allocation3 [shape = 's32[1]{0}', space=sflag, size = 0x4, scoped, tag = 'scoped memory for transformer_block_forward.1']
    #allocation4 [shape = 's32[1]{0}', space=sflag, size = 0x4, scoped, tag = 'scoped memory for transformer_block_forward.1']
    #allocation5 [shape = 'u8[172032]{0}', space=vmem, size = 0x2a000, scoped, tag = 'input window, operand 1, single buffered']
    #allocation6 [shape = 's32[1]{0}', space=sflag, size = 0x4, scoped, tag = 'scoped memory for transformer_block_forward.1']
    #allocation7 [shape = 'u8[8192]{0}', space=vmem, size = 0x2000, scoped, tag = 'output window, operand 0, single buffered']
    %7 = vsyncpa [#allocation3], 0
    %8 = vsyncpa [#allocation6], 0
    %9 = vsyncpa [#allocation4], 0
    // Predicated region
    $region2: #{transformer_block_forward.1} parent=1 // pred_check
      _
    $region3: #{transformer_block_forward.1} parent=1 // pred_check_branch
      %11 = sbr.rel (0) target = $region5
    $region4: #{transformer_block_forward.1} parent=1 // pred_region
      %s13 = ssub.s32 256, 256
      %14 = vsyncadd [#allocation3], %s13
      %s15 = sshll.u32 [#allocation2], 4
      %s16 = int_to_ptr.vmem [resolvable:$true] %s15
      %21 = dma.hbm_to_vmem [thread:$0]  %s0, 256, %s16, [#allocation3], 128, 128, 8
    $region5: #{transformer_block_forward.1} parent=1 // pred_fallthru
      _
    // Predicated region
    $region6: #{transformer_block_forward.1} parent=1 // pred_check
      _
    $region7: #{transformer_block_forward.1} parent=1 // pred_check_branch
      %23 = sbr.rel (0) target = $region9
    $region8: #{transformer_block_forward.1} parent=1 // pred_region
      %s25 = ssub.s32 5376, 5376
      %26 = vsyncadd [#allocation6], %s25
      %s27 = sshll.u32 [#allocation5], 4
      %s28 = int_to_ptr.vmem [resolvable:$true] %s27
      %33 = dma.hbm_to_vmem [thread:$0]  %s1, 5376, %s28, [#allocation6], 128, 128, 8
    $region9: #{transformer_block_forward.1} parent=1 // pred_fallthru
      _
    // Predicated region
    $region10: #{transformer_block_forward.1} parent=1 // pred_check
      _
    $region11: #{transformer_block_forward.1} parent=1 // pred_check_branch
      %35 = sbr.rel (0) target = $region13
    $region12: #{transformer_block_forward.1} parent=1 // pred_region
      %36 = dma.done [#allocation3], 256
    $region13: #{transformer_block_forward.1} parent=1 // pred_fallthru
      _
    // Predicated region
    $region14: #{transformer_block_forward.1} parent=1 // pred_check
      _
    $region15: #{transformer_block_forward.1} parent=1 // pred_check_branch
      %38 = sbr.rel (0) target = $region17
    $region16: #{transformer_block_forward.1} parent=1 // pred_region
      %39 = dma.done [#allocation6], 5376
    $region17: #{transformer_block_forward.1} parent=1 // pred_fallthru
      _
    %v40 = vld [vmem:[#allocation2] sm:$0xff]
    %v41 = vld [vmem:[#allocation2 + $0x8] sm:$0xff]
    %v42 = vld [vmem:[#allocation5] sm:$0xff]
    %v43 = vld [vmem:[#allocation5 + $0x8] sm:$0xff]
    %v44 = vld [vmem:[#allocation5 + $0x10] sm:$0xff]
    %v45 = vld [vmem:[#allocation5 + $0x18] sm:$0xff]
    %v46 = vld [vmem:[#allocation5 + $0x20] sm:$0xff]
    %v47 = vld [vmem:[#allocation5 + $0x28] sm:$0xff]
    %v48 = vld [vmem:[#allocation5 + $0x30] sm:$0xff]
    %v49 = vld [vmem:[#allocation5 + $0x38] sm:$0xff]
    %v50 = vld [vmem:[#allocation5 + $0x40] sm:$0xff]
    %v51 = vld [vmem:[#allocation5 + $0x48] sm:$0xff]
    %v52 = vld [vmem:[#allocation5 + $0x50] sm:$0xff]
    %v53 = vld [vmem:[#allocation5 + $0x58] sm:$0xff]
    %v54 = vld [vmem:[#allocation5 + $0x60] sm:$0xff]
    %v55 = vld [vmem:[#allocation5 + $0x68] sm:$0xff]
    %v56 = vld [vmem:[#allocation5 + $0x70] sm:$0xff]
    %v57 = vld [vmem:[#allocation5 + $0x78] sm:$0xff]
    %v58 = vld [vmem:[#allocation5 + $0x80] sm:$0xff]
    %v59 = vld [vmem:[#allocation5 + $0x88] sm:$0xff]
    %v60 = vld [vmem:[#allocation5 + $0x90] sm:$0xff]
    %v61 = vld [vmem:[#allocation5 + $0x98] sm:$0xff]
    %v62 = vld [vmem:[#allocation5 + $0xa0] sm:$0xff]
    %v63 = vld [vmem:[#allocation5 + $0xa8] sm:$0xff]
    %v64 = vld [vmem:[#allocation5 + $0xb0] sm:$0xff]
    %v65 = vld [vmem:[#allocation5 + $0xb8] sm:$0xff]
    %v66 = vld [vmem:[#allocation5 + $0xc0] sm:$0xff]
    %v67 = vld [vmem:[#allocation5 + $0xc8] sm:$0xff]
    %v68 = vld [vmem:[#allocation5 + $0xd0] sm:$0xff]
    %v69 = vld [vmem:[#allocation5 + $0xd8] sm:$0xff]
    %v70 = vld [vmem:[#allocation5 + $0xe0] sm:$0xff]
    %v71 = vld [vmem:[#allocation5 + $0xe8] sm:$0xff]
    %v72 = vld [vmem:[#allocation5 + $0xf0] sm:$0xff]
    %v73 = vld [vmem:[#allocation5 + $0xf8] sm:$0xff]
    %v74 = vld [vmem:[#allocation5 + $0x100] sm:$0xff]
    %v75 = vld [vmem:[#allocation5 + $0x108] sm:$0xff]
    %v76 = vld [vmem:[#allocation5 + $0x110] sm:$0xff]
    %v77 = vld [vmem:[#allocation5 + $0x118] sm:$0xff]
    %v78 = vld [vmem:[#allocation5 + $0x120] sm:$0xff]
    %v79 = vld [vmem:[#allocation5 + $0x128] sm:$0xff]
    %v80 = vld [vmem:[#allocation5 + $0x130] sm:$0xff]
    %v81 = vld [vmem:[#allocation5 + $0x138] sm:$0xff]
    %v82 = vld [vmem:[#allocation5 + $0x140] sm:$0xff]
    %v83 = vld [vmem:[#allocation5 + $0x148] sm:$0xff]
    %v84 = vmul.f32 %v40, %v40
    %v85 = vmul.f32 %v41, %v41
    %vm86 = vcmask 261120
    %v87 = vsel %vm86, %v84, 0.0
    %88 = vadd.xlane.f32.xlu0 %v87
    %v89 = vpop.xlane.xlu0 %88
    %v90 = vsel %vm86, %v85, 0.0
    %91 = vadd.xlane.f32.xlu0 %v90
    %v92 = vpop.xlane.xlu0 %91
    %v93 = vrcp.pop 32.0
    %v94 = vmul.f32 %v89, %v93
    %v95 = vmul.f32 %v92, %v93
    %v96 = vadd.f32 %v94, 1e-06
    %v97 = vadd.f32 %v95, 1e-06
    %v98 = vrsqrt.pop %v96
    %v99 = vrsqrt.pop %v97
    %v100 = vmul.f32 %v40, %v98
    %v101 = vmul.f32 %v41, %v99
    %v103 = vsel %vm86, %v100, 0
    %v106 = vsel %vm86, %v101, 0
    %108 = vmatprep.subr.mxu0 0.0
    %109 = vmatpush1.msra.mxu0 0.0
    %110 = vmatprep.subr.mxu0 0.0
    %111 = vmatpush1.msra.mxu0 0.0
    %112 = vmatprep.subr.mxu0 0.0
    %113 = vmatpush1.msra.mxu0 0.0
    %114 = vmatprep.subr.mxu0 0.0
    %115 = vmatpush1.msra.mxu0 0.0
    %116 = vmatprep.subr.mxu0 0.0
    %117 = vmatpush1.msra.mxu0 0.0
    %118 = vmatprep.subr.mxu0 0.0
    %119 = vmatpush1.msra.mxu0 0.0
    %120 = vmatprep.subr.mxu0 0.0
    %121 = vmatpush1.msra.mxu0 0.0
    %122 = vmatprep.subr.mxu0 0.0
    %123 = vmatpush1.msra.mxu0 0.0
    %124 = vmatprep.subr.mxu0 0.0
    %125 = vmatpush1.msra.mxu0 0.0
    %126 = vmatprep.subr.mxu0 0.0
    %127 = vmatpush1.msra.mxu0 0.0
    %128 = vmatprep.subr.mxu0 0.0
    %129 = vmatpush1.msra.mxu0 0.0
    %130 = vmatprep.subr.mxu0 0.0
    %131 = vmatpush1.msra.mxu0 0.0
    %132 = vmatprep.subr.mxu0 0.0
    %133 = vmatpush1.msra.mxu0 %v45
    %134 = vmatprep.subr.mxu0 0.0
    %135 = vmatpush1.msra.mxu0 %v44
    %136 = vmatprep.subr.mxu0 0.0
    %137 = vmatpush1.msra.mxu0 %v43
    %138 = vmatprep.subr.mxu0 0.0
    %139 = vmatpush1.msra.mxu0 %v42
    %140 = vmatprep.subr.mxu0 0.0
    %141 = vmatpush2.msra.mxu0 0.0
    %142 = vmatprep.subr.mxu0 0.0
    %143 = vmatpush2.msra.mxu0 0.0
    %144 = vmatprep.subr.mxu0 0.0
    %145 = vmatpush2.msra.mxu0 0.0
    %146 = vmatprep.subr.mxu0 0.0
    %147 = vmatpush2.msra.mxu0 0.0
    %148 = vmatprep.subr.mxu0 0.0
    %149 = vmatpush2.msra.mxu0 0.0
    %150 = vmatprep.subr.mxu0 0.0
    %151 = vmatpush2.msra.mxu0 0.0
    %152 = vmatprep.subr.mxu0 0.0
    %153 = vmatpush2.msra.mxu0 0.0
    %154 = vmatprep.subr.mxu0 0.0
    %155 = vmatpush2.msra.mxu0 0.0
    %156 = vmatprep.subr.mxu0 0.0
    %157 = vmatpush2.msra.mxu0 0.0
    %158 = vmatprep.subr.mxu0 0.0
    %159 = vmatpush2.msra.mxu0 0.0
    %160 = vmatprep.subr.mxu0 0.0
    %161 = vmatpush2.msra.mxu0 0.0
    %162 = vmatprep.subr.mxu0 0.0
    %163 = vmatpush2.msra.mxu0 0.0
    %164 = vmatprep.subr.mxu0 0.0
    %165 = vmatpush2.msra.mxu0 0.0
    %166 = vmatprep.subr.mxu0 0.0
    %167 = vmatpush2.msra.mxu0 0.0
    %168 = vmatprep.subr.mxu0 0.0
    %169 = vmatpush2.msra.mxu0 0.0
    %170 = vmatprep.subr.mxu0 0.0
    %171 = vmatpush2.msra.mxu0 0.0
    %172 = vmatprep.mubr.f32.mxu0 0.0
    %173 = vmatmul.mubr.f32.gmra.mxu0 %v103
    %v174 = vpop.f32.mrf.mxu0
    %v175 = vadd.f32 0.0, %v174
    %v176 = vpop.f32.mrf.mxu0
    %177 = vmatprep.mubr.f32.mxu0 0.0
    %178 = vmatmul.mubr.f32.gmra.mxu0 %v106
    %v179 = vpop.f32.mrf.mxu0
    %v180 = vadd.f32 0.0, %v179
    %v181 = vpop.f32.mrf.mxu0
    %182 = vdwg.mxu0
    %v183 = vmul.f32 %v175, %v78
    %v184 = vmul.f32 %v180, %v79
    %vm185 = vcmask 1047808
    %186 = vrot.lane.b32.xlu0 %v175, 32
    %v187 = vpop.permute.xlu0 %186
    %v188 = vsel %vm185, %v187, %v175
    %189 = vrot.lane.b32.xlu0 %v180, 32
    %v190 = vpop.permute.xlu0 %189
    %v191 = vsel %vm185, %v190, %v180
    %192 = vrot.lane.b32.xlu0 %v188, 32
    %v193 = vpop.permute.xlu0 %192
    %194 = vrot.lane.b32.xlu0 %v191, 32
    %v195 = vpop.permute.xlu0 %194
    %v196 = vsel %vm185, %v193, %v175
    %v197 = vsel %vm185, %v195, %v180
    %200 = vrot.lane.b32.xlu0 %v80, 16
    %v201 = vpop.permute.xlu0 %200
    %202 = vrot.lane.b32.xlu0 %v81, 16
    %v203 = vpop.permute.xlu0 %202
    %v206 = vmul.f32 %v196, %v201
    %v207 = vmul.f32 %v197, %v203
    %210 = vrot.lane.b32.xlu0 %v206, 112
    %v211 = vpop.permute.xlu0 %210
    %212 = vrot.lane.b32.xlu0 %v207, 112
    %v213 = vpop.permute.xlu0 %212
    %v216 = vadd.f32 %v183, %v211
    %v217 = vadd.f32 %v184, %v213
    %220 = vrot.lane.b32.xlu0 %v78, 32
    %v221 = vpop.permute.xlu0 %220
    %222 = vrot.lane.b32.xlu0 %v79, 32
    %v223 = vpop.permute.xlu0 %222
    %v226 = vmul.f32 %v175, %v221
    %v227 = vmul.f32 %v180, %v223
    %230 = vrot.lane.b32.xlu0 %v175, 96
    %v231 = vpop.permute.xlu0 %230
    %232 = vrot.lane.b32.xlu0 %v180, 96
    %v233 = vpop.permute.xlu0 %232
    %236 = vrot.lane.b32.xlu0 %v231, 32
    %v237 = vpop.permute.xlu0 %236
    %v238 = vsel %vm185, %v237, %v231
    %239 = vrot.lane.b32.xlu0 %v233, 32
    %v240 = vpop.permute.xlu0 %239
    %v241 = vsel %vm185, %v240, %v233
    %242 = vrot.lane.b32.xlu0 %v238, 32
    %v243 = vpop.permute.xlu0 %242
    %244 = vrot.lane.b32.xlu0 %v241, 32
    %v245 = vpop.permute.xlu0 %244
    %v246 = vsel %vm185, %v243, %v231
    %v247 = vsel %vm185, %v245, %v233
    %v248 = vmul.f32 %v246, %v201
    %v249 = vmul.f32 %v247, %v203
    %252 = vrot.lane.b32.xlu0 %v248, 16
    %v253 = vpop.permute.xlu0 %252
    %254 = vrot.lane.b32.xlu0 %v249, 16
    %v255 = vpop.permute.xlu0 %254
    %v258 = vadd.f32 %v226, %v253
    %v259 = vadd.f32 %v227, %v255
    %268 = vrot.lane.b32.xlu0 %v62, 32
    %v269 = vpop.permute.xlu0 %268
    %270 = vrot.lane.b32.xlu0 %v63, 32
    %v271 = vpop.permute.xlu0 %270
    %272 = vrot.lane.b32.xlu0 %v64, 32
    %v273 = vpop.permute.xlu0 %272
    %274 = vrot.lane.b32.xlu0 %v65, 32
    %v275 = vpop.permute.xlu0 %274
    %276 = vrot.lane.b32.xlu0 %v66, 32
    %v277 = vpop.permute.xlu0 %276
    %278 = vrot.lane.b32.xlu0 %v67, 32
    %v279 = vpop.permute.xlu0 %278
    %280 = vrot.lane.b32.xlu0 %v68, 32
    %v281 = vpop.permute.xlu0 %280
    %282 = vrot.lane.b32.xlu0 %v69, 32
    %v283 = vpop.permute.xlu0 %282
    %v292 = vmul.f32 %v258, %v269
    %v293 = vmul.f32 %v259, %v271
    %v294 = vmul.f32 %v258, %v273
    %v295 = vmul.f32 %v259, %v275
    %v296 = vmul.f32 %v258, %v277
    %v297 = vmul.f32 %v259, %v279
    %v298 = vmul.f32 %v258, %v281
    %v299 = vmul.f32 %v259, %v283
    %308 = vrot.lane.b32.xlu0 %v292, 96
    %v309 = vpop.permute.xlu0 %308
    %310 = vrot.lane.b32.xlu0 %v293, 96
    %v311 = vpop.permute.xlu0 %310
    %312 = vrot.lane.b32.xlu0 %v294, 96
    %v313 = vpop.permute.xlu0 %312
    %314 = vrot.lane.b32.xlu0 %v295, 96
    %v315 = vpop.permute.xlu0 %314
    %316 = vrot.lane.b32.xlu0 %v296, 96
    %v317 = vpop.permute.xlu0 %316
    %318 = vrot.lane.b32.xlu0 %v297, 96
    %v319 = vpop.permute.xlu0 %318
    %320 = vrot.lane.b32.xlu0 %v298, 96
    %v321 = vpop.permute.xlu0 %320
    %322 = vrot.lane.b32.xlu0 %v299, 96
    %v323 = vpop.permute.xlu0 %322
    %v325 = vsel %vm86, %v216, 0
    %v328 = vsel %vm86, %v217, 0
    %v330 = vsel %vm86, %v309, 0
    %v332 = vsel %vm86, %v311, 0
    %v334 = vsel %vm86, %v313, 0
    %v336 = vsel %vm86, %v315, 0
    %v338 = vsel %vm86, %v317, 0
    %v340 = vsel %vm86, %v319, 0
    %v342 = vsel %vm86, %v321, 0
    %v344 = vsel %vm86, %v323, 0
    %346 = vmatprep.subr.mxu0 0.0
    %347 = vmatpush1.xpose.msra.mxu0 0.0
    %348 = vmatprep.subr.mxu0 0.0
    %349 = vmatpush1.xpose.msra.mxu0 0.0
    %350 = vmatprep.subr.mxu0 0.0
    %351 = vmatpush1.xpose.msra.mxu0 0.0
    %352 = vmatprep.subr.mxu0 0.0
    %353 = vmatpush1.xpose.msra.mxu0 0.0
    %354 = vmatprep.subr.mxu0 0.0
    %355 = vmatpush1.xpose.msra.mxu0 0.0
    %356 = vmatprep.subr.mxu0 0.0
    %357 = vmatpush1.xpose.msra.mxu0 0.0
    %358 = vmatprep.subr.mxu0 0.0
    %359 = vmatpush1.xpose.msra.mxu0 0.0
    %360 = vmatprep.subr.mxu0 0.0
    %361 = vmatpush1.xpose.msra.mxu0 0.0
    %362 = vmatprep.subr.mxu0 0.0
    %363 = vmatpush1.xpose.msra.mxu0 %v344
    %364 = vmatprep.subr.mxu0 0.0
    %365 = vmatpush1.xpose.msra.mxu0 %v342
    %366 = vmatprep.subr.mxu0 0.0
    %367 = vmatpush1.xpose.msra.mxu0 %v340
    %368 = vmatprep.subr.mxu0 0.0
    %369 = vmatpush1.xpose.msra.mxu0 %v338
    %370 = vmatprep.subr.mxu0 0.0
    %371 = vmatpush1.xpose.msra.mxu0 %v336
    %372 = vmatprep.subr.mxu0 0.0
    %373 = vmatpush1.xpose.msra.mxu0 %v334
    %374 = vmatprep.subr.mxu0 0.0
    %375 = vmatpush1.xpose.msra.mxu0 %v332
    %376 = vmatprep.subr.mxu0 0.0
    %377 = vmatpush1.xpose.msra.mxu0 %v330
    %378 = vmatprep.subr.mxu0 0.0
    %379 = vmatpush2.xpose.msra.mxu0 0.0
    %380 = vmatprep.subr.mxu0 0.0
    %381 = vmatpush2.xpose.msra.mxu0 0.0
    %382 = vmatprep.subr.mxu0 0.0
    %383 = vmatpush2.xpose.msra.mxu0 0.0
    %384 = vmatprep.subr.mxu0 0.0
    %385 = vmatpush2.xpose.msra.mxu0 0.0
    %386 = vmatprep.subr.mxu0 0.0
    %387 = vmatpush2.xpose.msra.mxu0 0.0
    %388 = vmatprep.subr.mxu0 0.0
    %389 = vmatpush2.xpose.msra.mxu0 0.0
    %390 = vmatprep.subr.mxu0 0.0
    %391 = vmatpush2.xpose.msra.mxu0 0.0
    %392 = vmatprep.subr.mxu0 0.0
    %393 = vmatpush2.xpose.msra.mxu0 0.0
    %394 = vmatprep.subr.mxu0 0.0
    %395 = vmatpush2.xpose.msra.mxu0 0.0
    %396 = vmatprep.subr.mxu0 0.0
    %397 = vmatpush2.xpose.msra.mxu0 0.0
    %398 = vmatprep.subr.mxu0 0.0
    %399 = vmatpush2.xpose.msra.mxu0 0.0
    %400 = vmatprep.subr.mxu0 0.0
    %401 = vmatpush2.xpose.msra.mxu0 0.0
    %402 = vmatprep.subr.mxu0 0.0
    %403 = vmatpush2.xpose.msra.mxu0 0.0
    %404 = vmatprep.subr.mxu0 0.0
    %405 = vmatpush2.xpose.msra.mxu0 0.0
    %406 = vmatprep.subr.mxu0 0.0
    %407 = vmatpush2.xpose.msra.mxu0 0.0
    %408 = vmatprep.subr.mxu0 0.0
    %409 = vmatpush2.xpose.msra.mxu0 0.0
    %410 = vmatprep.mubr.f32.mxu0 0.0
    %411 = vmatmul.mubr.f32.gmra.mxu0 %v325
    %v412 = vpop.f32.mrf.mxu0
    %v413 = vadd.f32 %v82, %v412
    %v414 = vpop.f32.mrf.mxu0
    %415 = vmatprep.mubr.f32.mxu0 0.0
    %416 = vmatmul.mubr.f32.gmra.mxu0 %v328
    %v417 = vpop.f32.mrf.mxu0
    %v418 = vadd.f32 %v83, %v417
    %v419 = vpop.f32.mrf.mxu0
    %420 = vdwg.mxu0
    %vm421 = vcmask 523264
    %v422 = vsel %vm421, %v413, -inf
    %423 = vmax.xlane.f32.xlu0 %v422
    %v424 = vpop.xlane.xlu0 %423
    %v425 = vsel %vm421, %v418, -inf
    %426 = vmax.xlane.f32.xlu0 %v425
    %v427 = vpop.xlane.xlu0 %426
    %v428 = vsub.f32 %v413, %v424
    %v429 = vsub.f32 %v418, %v427
    %v430 = vmul.f32 %v428, 1.442695
    %v431 = vpow.pop %v430
    %v432 = vmul.f32 %v429, 1.442695
    %v433 = vpow.pop %v432
    %442 = vrot.lane.b32.xlu0 %v70, 64
    %v443 = vpop.permute.xlu0 %442
    %444 = vrot.lane.b32.xlu0 %v71, 64
    %v445 = vpop.permute.xlu0 %444
    %446 = vrot.lane.b32.xlu0 %v72, 64
    %v447 = vpop.permute.xlu0 %446
    %448 = vrot.lane.b32.xlu0 %v73, 64
    %v449 = vpop.permute.xlu0 %448
    %450 = vrot.lane.b32.xlu0 %v74, 64
    %v451 = vpop.permute.xlu0 %450
    %452 = vrot.lane.b32.xlu0 %v75, 64
    %v453 = vpop.permute.xlu0 %452
    %454 = vrot.lane.b32.xlu0 %v76, 64
    %v455 = vpop.permute.xlu0 %454
    %456 = vrot.lane.b32.xlu0 %v77, 64
    %v457 = vpop.permute.xlu0 %456
    %v466 = vmul.f32 %v175, %v443
    %v467 = vmul.f32 %v180, %v445
    %v468 = vmul.f32 %v175, %v447
    %v469 = vmul.f32 %v180, %v449
    %v470 = vmul.f32 %v175, %v451
    %v471 = vmul.f32 %v180, %v453
    %v472 = vmul.f32 %v175, %v455
    %v473 = vmul.f32 %v180, %v457
    %482 = vrot.lane.b32.xlu0 %v466, 64
    %v483 = vpop.permute.xlu0 %482
    %484 = vrot.lane.b32.xlu0 %v467, 64
    %v485 = vpop.permute.xlu0 %484
    %486 = vrot.lane.b32.xlu0 %v468, 64
    %v487 = vpop.permute.xlu0 %486
    %488 = vrot.lane.b32.xlu0 %v469, 64
    %v489 = vpop.permute.xlu0 %488
    %490 = vrot.lane.b32.xlu0 %v470, 64
    %v491 = vpop.permute.xlu0 %490
    %492 = vrot.lane.b32.xlu0 %v471, 64
    %v493 = vpop.permute.xlu0 %492
    %494 = vrot.lane.b32.xlu0 %v472, 64
    %v495 = vpop.permute.xlu0 %494
    %496 = vrot.lane.b32.xlu0 %v473, 64
    %v497 = vpop.permute.xlu0 %496
    %v507 = vsel %vm421, %v431, 0
    %v510 = vsel %vm421, %v433, 0
    %512 = vmatprep.subr.mxu0 0.0
    %513 = vmatpush1.msra.mxu0 0.0
    %514 = vmatprep.subr.mxu0 0.0
    %515 = vmatpush1.msra.mxu0 0.0
    %516 = vmatprep.subr.mxu0 0.0
    %517 = vmatpush1.msra.mxu0 0.0
    %518 = vmatprep.subr.mxu0 0.0
    %519 = vmatpush1.msra.mxu0 0.0
    %520 = vmatprep.subr.mxu0 0.0
    %521 = vmatpush1.msra.mxu0 0.0
    %522 = vmatprep.subr.mxu0 0.0
    %523 = vmatpush1.msra.mxu0 0.0
    %524 = vmatprep.subr.mxu0 0.0
    %525 = vmatpush1.msra.mxu0 0.0
    %526 = vmatprep.subr.mxu0 0.0
    %527 = vmatpush1.msra.mxu0 0.0
    %528 = vmatprep.subr.mxu0 0.0
    %529 = vmatpush1.msra.mxu0 %v497
    %530 = vmatprep.subr.mxu0 0.0
    %531 = vmatpush1.msra.mxu0 %v495
    %532 = vmatprep.subr.mxu0 0.0
    %533 = vmatpush1.msra.mxu0 %v493
    %534 = vmatprep.subr.mxu0 0.0
    %535 = vmatpush1.msra.mxu0 %v491
    %536 = vmatprep.subr.mxu0 0.0
    %537 = vmatpush1.msra.mxu0 %v489
    %538 = vmatprep.subr.mxu0 0.0
    %539 = vmatpush1.msra.mxu0 %v487
    %540 = vmatprep.subr.mxu0 0.0
    %541 = vmatpush1.msra.mxu0 %v485
    %542 = vmatprep.subr.mxu0 0.0
    %543 = vmatpush1.msra.mxu0 %v483
    %544 = vmatprep.subr.mxu0 0.0
    %545 = vmatpush2.msra.mxu0 0.0
    %546 = vmatprep.subr.mxu0 0.0
    %547 = vmatpush2.msra.mxu0 0.0
    %548 = vmatprep.subr.mxu0 0.0
    %549 = vmatpush2.msra.mxu0 0.0
    %550 = vmatprep.subr.mxu0 0.0
    %551 = vmatpush2.msra.mxu0 0.0
    %552 = vmatprep.subr.mxu0 0.0
    %553 = vmatpush2.msra.mxu0 0.0
    %554 = vmatprep.subr.mxu0 0.0
    %555 = vmatpush2.msra.mxu0 0.0
    %556 = vmatprep.subr.mxu0 0.0
    %557 = vmatpush2.msra.mxu0 0.0
    %558 = vmatprep.subr.mxu0 0.0
    %559 = vmatpush2.msra.mxu0 0.0
    %560 = vmatprep.subr.mxu0 0.0
    %561 = vmatpush2.msra.mxu0 0.0
    %562 = vmatprep.subr.mxu0 0.0
    %563 = vmatpush2.msra.mxu0 0.0
    %564 = vmatprep.subr.mxu0 0.0
    %565 = vmatpush2.msra.mxu0 0.0
    %566 = vmatprep.subr.mxu0 0.0
    %567 = vmatpush2.msra.mxu0 0.0
    %568 = vmatprep.subr.mxu0 0.0
    %569 = vmatpush2.msra.mxu0 0.0
    %570 = vmatprep.subr.mxu0 0.0
    %571 = vmatpush2.msra.mxu0 0.0
    %572 = vmatprep.subr.mxu0 0.0
    %573 = vmatpush2.msra.mxu0 0.0
    %574 = vmatprep.subr.mxu0 0.0
    %575 = vmatpush2.msra.mxu0 0.0
    %576 = vmatprep.mubr.f32.mxu0 0.0
    %577 = vmatmul.mubr.f32.gmra.mxu0 %v507
    %v578 = vpop.f32.mrf.mxu0
    %v579 = vadd.f32 0.0, %v578
    %v580 = vpop.f32.mrf.mxu0
    %581 = vmatprep.mubr.f32.mxu0 0.0
    %582 = vmatmul.mubr.f32.gmra.mxu0 %v510
    %v583 = vpop.f32.mrf.mxu0
    %v584 = vadd.f32 0.0, %v583
    %v585 = vpop.f32.mrf.mxu0
    %586 = vdwg.mxu0
    %587 = vmatprep.subr.mxu0 0.0
    %588 = vmatpush1.msra.mxu0 0.0
    %589 = vmatprep.subr.mxu0 0.0
    %590 = vmatpush1.msra.mxu0 0.0
    %591 = vmatprep.subr.mxu0 0.0
    %592 = vmatpush1.msra.mxu0 0.0
    %593 = vmatprep.subr.mxu0 0.0
    %594 = vmatpush1.msra.mxu0 0.0
    %595 = vmatprep.subr.mxu0 0.0
    %596 = vmatpush1.msra.mxu0 0.0
    %597 = vmatprep.subr.mxu0 0.0
    %598 = vmatpush1.msra.mxu0 0.0
    %599 = vmatprep.subr.mxu0 0.0
    %600 = vmatpush1.msra.mxu0 0.0
    %601 = vmatprep.subr.mxu0 0.0
    %602 = vmatpush1.msra.mxu0 0.0
    %603 = vmatprep.subr.mxu0 0.0
    %604 = vmatpush1.msra.mxu0 %v77
    %605 = vmatprep.subr.mxu0 0.0
    %606 = vmatpush1.msra.mxu0 %v76
    %607 = vmatprep.subr.mxu0 0.0
    %608 = vmatpush1.msra.mxu0 %v75
    %609 = vmatprep.subr.mxu0 0.0
    %610 = vmatpush1.msra.mxu0 %v74
    %611 = vmatprep.subr.mxu0 0.0
    %612 = vmatpush1.msra.mxu0 %v73
    %613 = vmatprep.subr.mxu0 0.0
    %614 = vmatpush1.msra.mxu0 %v72
    %615 = vmatprep.subr.mxu0 0.0
    %616 = vmatpush1.msra.mxu0 %v71
    %617 = vmatprep.subr.mxu0 0.0
    %618 = vmatpush1.msra.mxu0 %v70
    %619 = vmatprep.subr.mxu0 0.0
    %620 = vmatpush2.msra.mxu0 0.0
    %621 = vmatprep.subr.mxu0 0.0
    %622 = vmatpush2.msra.mxu0 0.0
    %623 = vmatprep.subr.mxu0 0.0
    %624 = vmatpush2.msra.mxu0 0.0
    %625 = vmatprep.subr.mxu0 0.0
    %626 = vmatpush2.msra.mxu0 0.0
    %627 = vmatprep.subr.mxu0 0.0
    %628 = vmatpush2.msra.mxu0 0.0
    %629 = vmatprep.subr.mxu0 0.0
    %630 = vmatpush2.msra.mxu0 0.0
    %631 = vmatprep.subr.mxu0 0.0
    %632 = vmatpush2.msra.mxu0 0.0
    %633 = vmatprep.subr.mxu0 0.0
    %634 = vmatpush2.msra.mxu0 0.0
    %635 = vmatprep.subr.mxu0 0.0
    %636 = vmatpush2.msra.mxu0 0.0
    %637 = vmatprep.subr.mxu0 0.0
    %638 = vmatpush2.msra.mxu0 0.0
    %639 = vmatprep.subr.mxu0 0.0
    %640 = vmatpush2.msra.mxu0 0.0
    %641 = vmatprep.subr.mxu0 0.0
    %642 = vmatpush2.msra.mxu0 0.0
    %643 = vmatprep.subr.mxu0 0.0
    %644 = vmatpush2.msra.mxu0 0.0
    %645 = vmatprep.subr.mxu0 0.0
    %646 = vmatpush2.msra.mxu0 0.0
    %647 = vmatprep.subr.mxu0 0.0
    %648 = vmatpush2.msra.mxu0 0.0
    %649 = vmatprep.subr.mxu0 0.0
    %650 = vmatpush2.msra.mxu0 0.0
    %651 = vmatprep.mubr.f32.mxu0 0.0
    %652 = vmatmul.mubr.f32.gmra.mxu0 %v507
    %v653 = vpop.f32.mrf.mxu0
    %v654 = vadd.f32 0.0, %v653
    %v655 = vpop.f32.mrf.mxu0
    %656 = vmatprep.mubr.f32.mxu0 0.0
    %657 = vmatmul.mubr.f32.gmra.mxu0 %v510
    %v658 = vpop.f32.mrf.mxu0
    %v659 = vadd.f32 0.0, %v658
    %v660 = vpop.f32.mrf.mxu0
    %661 = vdwg.mxu0
    %v662 = vrcp.pop %v654
    %v663 = vmul.f32 %v579, %v662
    %v664 = vrcp.pop %v659
    %v665 = vmul.f32 %v584, %v664
    %v667 = vsel %vm86, %v663, 0
    %v670 = vsel %vm86, %v665, 0
    %672 = vmatprep.subr.mxu0 0.0
    %673 = vmatpush1.msra.mxu0 0.0
    %674 = vmatprep.subr.mxu0 0.0
    %675 = vmatpush1.msra.mxu0 0.0
    %676 = vmatprep.subr.mxu0 0.0
    %677 = vmatpush1.msra.mxu0 0.0
    %678 = vmatprep.subr.mxu0 0.0
    %679 = vmatpush1.msra.mxu0 0.0
    %680 = vmatprep.subr.mxu0 0.0
    %681 = vmatpush1.msra.mxu0 0.0
    %682 = vmatprep.subr.mxu0 0.0
    %683 = vmatpush1.msra.mxu0 0.0
    %684 = vmatprep.subr.mxu0 0.0
    %685 = vmatpush1.msra.mxu0 0.0
    %686 = vmatprep.subr.mxu0 0.0
    %687 = vmatpush1.msra.mxu0 0.0
    %688 = vmatprep.subr.mxu0 0.0
    %689 = vmatpush1.msra.mxu0 0.0
    %690 = vmatprep.subr.mxu0 0.0
    %691 = vmatpush1.msra.mxu0 0.0
    %692 = vmatprep.subr.mxu0 0.0
    %693 = vmatpush1.msra.mxu0 0.0
    %694 = vmatprep.subr.mxu0 0.0
    %695 = vmatpush1.msra.mxu0 0.0
    %696 = vmatprep.subr.mxu0 0.0
    %697 = vmatpush1.msra.mxu0 %v53
    %698 = vmatprep.subr.mxu0 0.0
    %699 = vmatpush1.msra.mxu0 %v52
    %700 = vmatprep.subr.mxu0 0.0
    %701 = vmatpush1.msra.mxu0 %v51
    %702 = vmatprep.subr.mxu0 0.0
    %703 = vmatpush1.msra.mxu0 %v50
    %704 = vmatprep.subr.mxu0 0.0
    %705 = vmatpush2.msra.mxu0 0.0
    %706 = vmatprep.subr.mxu0 0.0
    %707 = vmatpush2.msra.mxu0 0.0
    %708 = vmatprep.subr.mxu0 0.0
    %709 = vmatpush2.msra.mxu0 0.0
    %710 = vmatprep.subr.mxu0 0.0
    %711 = vmatpush2.msra.mxu0 0.0
    %712 = vmatprep.subr.mxu0 0.0
    %713 = vmatpush2.msra.mxu0 0.0
    %714 = vmatprep.subr.mxu0 0.0
    %715 = vmatpush2.msra.mxu0 0.0
    %716 = vmatprep.subr.mxu0 0.0
    %717 = vmatpush2.msra.mxu0 0.0
    %718 = vmatprep.subr.mxu0 0.0
    %719 = vmatpush2.msra.mxu0 0.0
    %720 = vmatprep.subr.mxu0 0.0
    %721 = vmatpush2.msra.mxu0 0.0
    %722 = vmatprep.subr.mxu0 0.0
    %723 = vmatpush2.msra.mxu0 0.0
    %724 = vmatprep.subr.mxu0 0.0
    %725 = vmatpush2.msra.mxu0 0.0
    %726 = vmatprep.subr.mxu0 0.0
    %727 = vmatpush2.msra.mxu0 0.0
    %728 = vmatprep.subr.mxu0 0.0
    %729 = vmatpush2.msra.mxu0 0.0
    %730 = vmatprep.subr.mxu0 0.0
    %731 = vmatpush2.msra.mxu0 0.0
    %732 = vmatprep.subr.mxu0 0.0
    %733 = vmatpush2.msra.mxu0 0.0
    %734 = vmatprep.subr.mxu0 0.0
    %735 = vmatpush2.msra.mxu0 0.0
    %736 = vmatprep.mubr.f32.mxu0 0.0
    %737 = vmatmul.mubr.f32.gmra.mxu0 %v667
    %v738 = vpop.f32.mrf.mxu0
    %v739 = vadd.f32 0.0, %v738
    %v740 = vpop.f32.mrf.mxu0
    %741 = vmatprep.mubr.f32.mxu0 0.0
    %742 = vmatmul.mubr.f32.gmra.mxu0 %v670
    %v743 = vpop.f32.mrf.mxu0
    %v744 = vadd.f32 0.0, %v743
    %v745 = vpop.f32.mrf.mxu0
    %746 = vdwg.mxu0
    %v747 = vadd.f32 %v40, %v739
    %v748 = vadd.f32 %v41, %v744
    %v749 = vmul.f32 %v747, %v747
    %v750 = vmul.f32 %v748, %v748
    %v751 = vsel %vm86, %v749, 0.0
    %752 = vadd.xlane.f32.xlu0 %v751
    %v753 = vpop.xlane.xlu0 %752
    %v754 = vsel %vm86, %v750, 0.0
    %755 = vadd.xlane.f32.xlu0 %v754
    %v756 = vpop.xlane.xlu0 %755
    %v757 = vmul.f32 %v753, %v93
    %v758 = vmul.f32 %v756, %v93
    %v759 = vadd.f32 %v757, 1e-06
    %v760 = vadd.f32 %v758, 1e-06
    %v761 = vrsqrt.pop %v759
    %v762 = vrsqrt.pop %v760
    %v763 = vmul.f32 %v747, %v761
    %v764 = vmul.f32 %v748, %v762
    %v766 = vsel %vm86, %v763, 0
    %v769 = vsel %vm86, %v764, 0
    %771 = vmatprep.subr.mxu0 0.0
    %772 = vmatpush1.msra.mxu0 0.0
    %773 = vmatprep.subr.mxu0 0.0
    %774 = vmatpush1.msra.mxu0 0.0
    %775 = vmatprep.subr.mxu0 0.0
    %776 = vmatpush1.msra.mxu0 0.0
    %777 = vmatprep.subr.mxu0 0.0
    %778 = vmatpush1.msra.mxu0 0.0
    %779 = vmatprep.subr.mxu0 0.0
    %780 = vmatpush1.msra.mxu0 0.0
    %781 = vmatprep.subr.mxu0 0.0
    %782 = vmatpush1.msra.mxu0 0.0
    %783 = vmatprep.subr.mxu0 0.0
    %784 = vmatpush1.msra.mxu0 0.0
    %785 = vmatprep.subr.mxu0 0.0
    %786 = vmatpush1.msra.mxu0 0.0
    %787 = vmatprep.subr.mxu0 0.0
    %788 = vmatpush1.msra.mxu0 0.0
    %789 = vmatprep.subr.mxu0 0.0
    %790 = vmatpush1.msra.mxu0 0.0
    %791 = vmatprep.subr.mxu0 0.0
    %792 = vmatpush1.msra.mxu0 0.0
    %793 = vmatprep.subr.mxu0 0.0
    %794 = vmatpush1.msra.mxu0 0.0
    %795 = vmatprep.subr.mxu0 0.0
    %796 = vmatpush1.msra.mxu0 %v49
    %797 = vmatprep.subr.mxu0 0.0
    %798 = vmatpush1.msra.mxu0 %v48
    %799 = vmatprep.subr.mxu0 0.0
    %800 = vmatpush1.msra.mxu0 %v47
    %801 = vmatprep.subr.mxu0 0.0
    %802 = vmatpush1.msra.mxu0 %v46
    %803 = vmatprep.subr.mxu0 0.0
    %804 = vmatpush2.msra.mxu0 0.0
    %805 = vmatprep.subr.mxu0 0.0
    %806 = vmatpush2.msra.mxu0 0.0
    %807 = vmatprep.subr.mxu0 0.0
    %808 = vmatpush2.msra.mxu0 0.0
    %809 = vmatprep.subr.mxu0 0.0
    %810 = vmatpush2.msra.mxu0 0.0
    %811 = vmatprep.subr.mxu0 0.0
    %812 = vmatpush2.msra.mxu0 0.0
    %813 = vmatprep.subr.mxu0 0.0
    %814 = vmatpush2.msra.mxu0 0.0
    %815 = vmatprep.subr.mxu0 0.0
    %816 = vmatpush2.msra.mxu0 0.0
    %817 = vmatprep.subr.mxu0 0.0
    %818 = vmatpush2.msra.mxu0 0.0
    %819 = vmatprep.subr.mxu0 0.0
    %820 = vmatpush2.msra.mxu0 0.0
    %821 = vmatprep.subr.mxu0 0.0
    %822 = vmatpush2.msra.mxu0 0.0
    %823 = vmatprep.subr.mxu0 0.0
    %824 = vmatpush2.msra.mxu0 0.0
    %825 = vmatprep.subr.mxu0 0.0
    %826 = vmatpush2.msra.mxu0 0.0
    %827 = vmatprep.subr.mxu0 0.0
    %828 = vmatpush2.msra.mxu0 0.0
    %829 = vmatprep.subr.mxu0 0.0
    %830 = vmatpush2.msra.mxu0 0.0
    %831 = vmatprep.subr.mxu0 0.0
    %832 = vmatpush2.msra.mxu0 0.0
    %833 = vmatprep.subr.mxu0 0.0
    %834 = vmatpush2.msra.mxu0 0.0
    %835 = vmatprep.mubr.f32.mxu0 0.0
    %836 = vmatmul.mubr.f32.gmra.mxu0 %v766
    %v837 = vpop.f32.mrf.mxu0
    %v838 = vadd.f32 0.0, %v837
    %v839 = vpop.f32.mrf.mxu0
    %840 = vmatprep.mubr.f32.mxu0 0.0
    %841 = vmatmul.mubr.f32.gmra.mxu0 %v769
    %v842 = vpop.f32.mrf.mxu0
    %v843 = vadd.f32 0.0, %v842
    %v844 = vpop.f32.mrf.mxu0
    %845 = vdwg.mxu0
    %v846 = vxor.u32 %v838, 2147483648
    %v847 = vxor.u32 %v843, 2147483648
    %v848 = vmul.f32 %v846, 1.442695
    %v849 = vpow.pop %v848
    %v850 = vmul.f32 %v847, 1.442695
    %v851 = vpow.pop %v850
    %v852 = vadd.f32 %v849, 1.0
    %v853 = vadd.f32 %v851, 1.0
    %v854 = vrcp.pop %v852
    %v855 = vmul.f32 1.0, %v854
    %v856 = vrcp.pop %v853
    %v857 = vmul.f32 1.0, %v856
    %v858 = vmul.f32 %v838, %v855
    %v859 = vmul.f32 %v843, %v857
    %862 = vrot.lane.b32.xlu0 %v838, 64
    %v863 = vpop.permute.xlu0 %862
    %864 = vrot.lane.b32.xlu0 %v843, 64
    %v865 = vpop.permute.xlu0 %864
    %v868 = vmul.f32 %v858, %v863
    %v869 = vmul.f32 %v859, %v865
    %v871 = vsel %vm421, %v868, 0
    %v874 = vsel %vm421, %v869, 0
    %876 = vmatprep.subr.mxu0 0.0
    %877 = vmatpush1.msra.mxu0 0.0
    %878 = vmatprep.subr.mxu0 0.0
    %879 = vmatpush1.msra.mxu0 0.0
    %880 = vmatprep.subr.mxu0 0.0
    %881 = vmatpush1.msra.mxu0 0.0
    %882 = vmatprep.subr.mxu0 0.0
    %883 = vmatpush1.msra.mxu0 0.0
    %884 = vmatprep.subr.mxu0 0.0
    %885 = vmatpush1.msra.mxu0 0.0
    %886 = vmatprep.subr.mxu0 0.0
    %887 = vmatpush1.msra.mxu0 0.0
    %888 = vmatprep.subr.mxu0 0.0
    %889 = vmatpush1.msra.mxu0 0.0
    %890 = vmatprep.subr.mxu0 0.0
    %891 = vmatpush1.msra.mxu0 0.0
    %892 = vmatprep.subr.mxu0 0.0
    %893 = vmatpush1.msra.mxu0 %v61
    %894 = vmatprep.subr.mxu0 0.0
    %895 = vmatpush1.msra.mxu0 %v60
    %896 = vmatprep.subr.mxu0 0.0
    %897 = vmatpush1.msra.mxu0 %v59
    %898 = vmatprep.subr.mxu0 0.0
    %899 = vmatpush1.msra.mxu0 %v58
    %900 = vmatprep.subr.mxu0 0.0
    %901 = vmatpush1.msra.mxu0 %v57
    %902 = vmatprep.subr.mxu0 0.0
    %903 = vmatpush1.msra.mxu0 %v56
    %904 = vmatprep.subr.mxu0 0.0
    %905 = vmatpush1.msra.mxu0 %v55
    %906 = vmatprep.subr.mxu0 0.0
    %907 = vmatpush1.msra.mxu0 %v54
    %908 = vmatprep.subr.mxu0 0.0
    %909 = vmatpush2.msra.mxu0 0.0
    %910 = vmatprep.subr.mxu0 0.0
    %911 = vmatpush2.msra.mxu0 0.0
    %912 = vmatprep.subr.mxu0 0.0
    %913 = vmatpush2.msra.mxu0 0.0
    %914 = vmatprep.subr.mxu0 0.0
    %915 = vmatpush2.msra.mxu0 0.0
    %916 = vmatprep.subr.mxu0 0.0
    %917 = vmatpush2.msra.mxu0 0.0
    %918 = vmatprep.subr.mxu0 0.0
    %919 = vmatpush2.msra.mxu0 0.0
    %920 = vmatprep.subr.mxu0 0.0
    %921 = vmatpush2.msra.mxu0 0.0
    %922 = vmatprep.subr.mxu0 0.0
    %923 = vmatpush2.msra.mxu0 0.0
    %924 = vmatprep.subr.mxu0 0.0
    %925 = vmatpush2.msra.mxu0 0.0
    %926 = vmatprep.subr.mxu0 0.0
    %927 = vmatpush2.msra.mxu0 0.0
    %928 = vmatprep.subr.mxu0 0.0
    %929 = vmatpush2.msra.mxu0 0.0
    %930 = vmatprep.subr.mxu0 0.0
    %931 = vmatpush2.msra.mxu0 0.0
    %932 = vmatprep.subr.mxu0 0.0
    %933 = vmatpush2.msra.mxu0 0.0
    %934 = vmatprep.subr.mxu0 0.0
    %935 = vmatpush2.msra.mxu0 0.0
    %936 = vmatprep.subr.mxu0 0.0
    %937 = vmatpush2.msra.mxu0 0.0
    %938 = vmatprep.subr.mxu0 0.0
    %939 = vmatpush2.msra.mxu0 0.0
    %940 = vmatprep.mubr.f32.mxu0 0.0
    %941 = vmatmul.mubr.f32.gmra.mxu0 %v871
    %v942 = vpop.f32.mrf.mxu0
    %v943 = vadd.f32 0.0, %v942
    %v944 = vpop.f32.mrf.mxu0
    %945 = vmatprep.mubr.f32.mxu0 0.0
    %946 = vmatmul.mubr.f32.gmra.mxu0 %v874
    %v947 = vpop.f32.mrf.mxu0
    %v948 = vadd.f32 0.0, %v947
    %v949 = vpop.f32.mrf.mxu0
    %950 = vdwg.mxu0
    %v951 = vadd.f32 %v747, %v943
    %v952 = vadd.f32 %v748, %v948
    %953 = vst.msk [vmem:[#allocation7] sm:$0xff] %vm86, %v951
    %954 = vst.msk [vmem:[#allocation7 + $0x8] sm:$0xff] %vm86, %v952
    // Predicated region
    $region18: #{transformer_block_forward.1} parent=1 // pred_check
      _
    $region19: #{transformer_block_forward.1} parent=1 // pred_check_branch
      %956 = sbr.rel (0) target = $region21
    $region20: #{transformer_block_forward.1} parent=1 // pred_region
      %s958 = ssub.s32 256, 256
      %959 = vsyncadd [#allocation4], %s958
      %s960 = sshll.u32 [#allocation7], 4
      %s961 = int_to_ptr.vmem [resolvable:$true] %s960
      %966 = dma.vmem_to_hbm [thread:$0]  %s961, 256, %s2, [#allocation4], 128, 128, 8
    $region21: #{transformer_block_forward.1} parent=1 // pred_fallthru
      _
    // Predicated region
    $region22: #{transformer_block_forward.1} parent=1 // pred_check
      _
    $region23: #{transformer_block_forward.1} parent=1 // pred_check_branch
      %968 = sbr.rel (0) target = $region25
    $region24: #{transformer_block_forward.1} parent=1 // pred_region
      %969 = dma.done [#allocation4], 256
    $region25: #{transformer_block_forward.1} parent=1 // pred_fallthru
      _
    %970 = vsyncpa [#allocation3], 1
    %971 = vsyncpa [#allocation6], 1
    %972 = vsyncpa [#allocation4], 1

</llo_original>
